<compile_context>
chip_gen: v7x
topology: tpu7x:2x2x1
jax: 0.10.0
libtpu: 0.0.40
codegen_flags: <defaults>
</compile_context>

<pallas_src>
import functools
import math

import jax
import jax.numpy as jnp
from jax.experimental import pallas as pl
from jax.experimental.pallas import tpu as pltpu

_MiB = 1024 * 1024


# ---------------------------------------------------------------------------
# Generation-aware VMEM budgeting
# ---------------------------------------------------------------------------
def _vmem_capacity_bytes():
    try:
        return int(pltpu.get_tpu_info().vmem_capacity_bytes)
    except Exception:
        return 64 * _MiB          # conservative default (v7x-sized VMEM)


def _vmem_limit_bytes():
    cap = _vmem_capacity_bytes()
    # ~96 MiB scoped limit on 128 MiB chips (v5e/v6e), ~32 MiB on 64 MiB (v7x).
    return min(cap, max(32 * _MiB, min(int(0.75 * cap), cap - 32 * _MiB)))


def _round_up(x, m):
    return ((x + m - 1) // m) * m


# ---------------------------------------------------------------------------
# Fully fused forward kernel (small graphs: whole problem resident in VMEM)
# ---------------------------------------------------------------------------
def _gcn_fused_kernel(*refs, training, dropout_rate):
    if training:
        (seed_ref, x_ref, adj_ref, w1_ref, b1_ref, w2_ref, b2_ref,
         out_ref) = refs
    else:
        (x_ref, adj_ref, w1_ref, b1_ref, w2_ref, b2_ref, out_ref) = refs
        seed_ref = None

    x = x_ref[...]
    adj = adj_ref[...]

    # ---- layer 1: h = relu(adj @ (x @ W1) + b1) ---------------------------
    support1 = jnp.dot(x, w1_ref[...], preferred_element_type=jnp.float32)
    h = jnp.dot(adj, support1, preferred_element_type=jnp.float32)
    h = jnp.maximum(h + b1_ref[...], 0.0)

    # ---- dropout (training mode only; identity in eval) -------------------
    if training:
        keep_prob = 1.0 - dropout_rate
        pltpu.prng_seed(seed_ref[0])
        bits = pltpu.prng_random_bits(h.shape)
        # low 24 bits -> uniform in [0, 1), independent of bit-signedness
        u = (bits & 0xFFFFFF).astype(jnp.float32) * (1.0 / (1 << 24))
        keep = u >= dropout_rate
        h = jnp.where(keep, h * (1.0 / keep_prob), 0.0)

    # ---- layer 2: y = adj @ (h @ W2) + b2 ----------------------------------
    support2 = jnp.dot(h, w2_ref[...], preferred_element_type=jnp.float32)
    y = jnp.dot(adj, support2, preferred_element_type=jnp.float32) + b2_ref[...]

    # ---- fused log_softmax epilogue (rows) ---------------------------------
    m = jnp.max(y, axis=-1, keepdims=True)
    shifted = y - m
    lse = jnp.log(jnp.sum(jnp.exp(shifted), axis=-1, keepdims=True))
    out_ref[...] = (shifted - lse).astype(out_ref.dtype)


def gcn_forward_fused(x, adj, params, *, dropout=0.5, training=False, seed=0):
    """Whole GCN forward in a single pallas_call (graph must fit in VMEM)."""
    w1, b1, w2, b2 = params
    n, _ = x.shape
    nhid = w1.shape[1]
    nclass = w2.shape[1]
    b1_2d = b1.reshape(1, nhid).astype(jnp.float32)
    b2_2d = b2.reshape(1, nclass).astype(jnp.float32)

    if training and not (0.0 <= dropout < 1.0):
        raise ValueError("dropout must be in [0, 1) for training")

    kernel = functools.partial(
        _gcn_fused_kernel, training=training, dropout_rate=float(dropout))

    def full(shape):
        return pl.BlockSpec(shape, lambda i: (0, 0))

    in_specs = [full(x.shape), full(adj.shape), full(w1.shape),
                full(b1_2d.shape), full(w2.shape), full(b2_2d.shape)]
    args = [x.astype(jnp.float32), adj.astype(jnp.float32), w1, b1_2d, w2, b2_2d]
    if training:
        in_specs = [pl.BlockSpec(memory_space=pltpu.MemorySpace.SMEM)] + in_specs
        args = [jnp.array([seed], dtype=jnp.int32)] + args

    return pl.pallas_call(
        kernel,
        out_shape=jax.ShapeDtypeStruct((n, nclass), jnp.float32),
        grid=(1,),
        in_specs=in_specs,
        out_specs=pl.BlockSpec((n, nclass), lambda i: (0, 0)),
        compiler_params=pltpu.CompilerParams(
            dimension_semantics=("arbitrary",),
            vmem_limit_bytes=_vmem_limit_bytes(),
        ),
    )(*args)


# ---------------------------------------------------------------------------
# Tiled path kernels
# ---------------------------------------------------------------------------
def _xw_kernel(x_ref, w_ref, out_ref):
    # support = x @ W   (inputs may already be bf16 in HBM; f32 accumulation)
    out_ref[...] = jnp.dot(
        x_ref[...], w_ref[...],
        preferred_element_type=jnp.float32).astype(out_ref.dtype)


def _layer1_kernel(adj_ref, s_ref, b1_ref, w2_ref, out_ref, acc_ref, *,
                   tk, support_resident):
    # support2 = relu(adj @ support1 + b1) @ W2    (h never written to HBM)
    k = pl.program_id(1)

    @pl.when(k == 0)
    def _():
        acc_ref[...] = jnp.zeros_like(acc_ref)

    if support_resident:
        start = pl.multiple_of(k * tk, tk)
        s = s_ref[pl.ds(start, tk), :]
    else:
        s = s_ref[...]
    acc_ref[...] += jnp.dot(adj_ref[...], s, preferred_element_type=jnp.float32)

    @pl.when(k == pl.num_programs(1) - 1)
    def _():
        h = jnp.maximum(acc_ref[...] + b1_ref[...], 0.0)
        out_ref[...] = jnp.dot(
            h.astype(w2_ref.dtype), w2_ref[...],
            preferred_element_type=jnp.float32).astype(out_ref.dtype)


def _layer2_kernel(adj_ref, s_ref, b2_ref, out_ref, *, tk, support_resident):
    # out = log_softmax(adj @ support2 + b2); accumulate directly into out_ref
    # (f32 output block is resident across the reduction axis -> no scratch).
    k = pl.program_id(1)

    @pl.when(k == 0)
    def _():
        out_ref[...] = jnp.zeros_like(out_ref)

    if support_resident:
        start = pl.multiple_of(k * tk, tk)
        s = s_ref[pl.ds(start, tk), :]
    else:
        s = s_ref[...]
    out_ref[...] += jnp.dot(adj_ref[...], s, preferred_element_type=jnp.float32)

    @pl.when(k == pl.num_programs(1) - 1)
    def _():
        y = out_ref[...] + b2_ref[...]
        m = jnp.max(y, axis=-1, keepdims=True)
        shifted = y - m
        lse = jnp.log(jnp.sum(jnp.exp(shifted), axis=-1, keepdims=True))
        out_ref[...] = shifted - lse


def _tile_and_pad(n, max_tile=512):
    """Pick an adj tile size and the padded problem size (pads when needed)."""
    for c in (max_tile, 256, 128):
        if n >= c and n % c == 0:
            return c, n
    if n <= max_tile:
        n_pad = _round_up(max(n, 8), 8)
        return n_pad, n_pad
    tile = max_tile if n >= 8 * max_tile else 128
    return tile, _round_up(n, tile)


def gcn_forward_tiled(x, adj, params, *, dropout=0.5, training=False,
                      use_bf16=False, max_tile=512):
    if training:
        # TODO(synk): training-mode dropout is only implemented in the fused path.
        raise NotImplementedError(
            "training-mode dropout not implemented for the tiled path")
    del dropout
    w1, b1, w2, b2 = params
    n, nfeat = x.shape
    nhid = w1.shape[1]
    nclass = w2.shape[1]

    tile, n_pad = _tile_and_pad(n, max_tile=max_tile)
    tm = tk = tile
    if n_pad != n:
        # Exact: padded adj columns are zero; padded output rows sliced off.
        x = jnp.pad(x, ((0, n_pad - n), (0, 0)))
        adj = jnp.pad(adj, ((0, n_pad - n), (0, n_pad - n)))

    # bf16 cast happens in HBM, *before* the pallas_calls, so the dominant
    # adj DMA moves half the bytes; kernels always accumulate in f32.
    in_dtype = jnp.bfloat16 if use_bf16 else jnp.float32
    adj_c = adj.astype(in_dtype)
    x_c = x.astype(in_dtype)
    w1_c = w1.astype(in_dtype)
    w2_c = w2.astype(in_dtype)
    b1_2d = b1.reshape(1, nhid).astype(jnp.float32)
    b2_2d = b2.reshape(1, nclass).astype(jnp.float32)
    itemsize = 2 if use_bf16 else 4

    vmem_limit = _vmem_limit_bytes()
    cp_rows = pltpu.CompilerParams(
        dimension_semantics=("parallel",), vmem_limit_bytes=vmem_limit)
    cp_rk = pltpu.CompilerParams(
        dimension_semantics=("parallel", "arbitrary"),
        vmem_limit_bytes=vmem_limit)

    grid_rows = n_pad // tm
    grid_k = n_pad // tk

    # --- support1 = x @ W1 (hoisted, row-tiled, computed exactly once) ------
    support1 = pl.pallas_call(
        _xw_kernel,
        out_shape=jax.ShapeDtypeStruct((n_pad, nhid), in_dtype),
        grid=(grid_rows,),
        in_specs=[pl.BlockSpec((tm, nfeat), lambda i: (i, 0)),
                  pl.BlockSpec((nfeat, nhid), lambda i: (0, 0))],
        out_specs=pl.BlockSpec((tm, nhid), lambda i: (i, 0)),
        compiler_params=cp_rows,
    )(x_c, w1_c)

    # --- layer 1 (+ fused h @ W2): support2 = relu(adj@support1 + b1) @ W2 --
    s1_resident = n_pad * nhid * itemsize <= 4 * _MiB
    s1_spec = (pl.BlockSpec((n_pad, nhid), lambda i, k: (0, 0)) if s1_resident
               else pl.BlockSpec((tk, nhid), lambda i, k: (k, 0)))
    support2 = pl.pallas_call(
        functools.partial(_layer1_kernel, tk=tk, support_resident=s1_resident),
        out_shape=jax.ShapeDtypeStruct((n_pad, nclass), in_dtype),
        grid=(grid_rows, grid_k),
        in_specs=[pl.BlockSpec((tm, tk), lambda i, k: (i, k)),
                  s1_spec,
                  pl.BlockSpec((1, nhid), lambda i, k: (0, 0)),
                  pl.BlockSpec((nhid, nclass), lambda i, k: (0, 0))],
        out_specs=pl.BlockSpec((tm, nclass), lambda i, k: (i, 0)),
        scratch_shapes=[pltpu.VMEM((tm, nhid), jnp.float32)],
        compiler_params=cp_rk,
    )(adj_c, support1, b1_2d, w2_c)

    # --- layer 2: out = log_softmax(adj @ support2 + b2) --------------------
    s2_resident = n_pad * nclass * itemsize <= 4 * _MiB
    s2_spec = (pl.BlockSpec((n_pad, nclass), lambda i, k: (0, 0)) if s2_resident
               else pl.BlockSpec((tk, nclass), lambda i, k: (k, 0)))
    out = pl.pallas_call(
        functools.partial(_layer2_kernel, tk=tk, support_resident=s2_resident),
        out_shape=jax.ShapeDtypeStruct((n_pad, nclass), jnp.float32),
        grid=(grid_rows, grid_k),
        in_specs=[pl.BlockSpec((tm, tk), lambda i, k: (i, k)),
                  s2_spec,
                  pl.BlockSpec((1, nclass), lambda i, k: (0, 0))],
        out_specs=pl.BlockSpec((tm, nclass), lambda i, k: (i, 0)),
        compiler_params=cp_rk,
    )(adj_c, support2, b2_2d)

    return out[:n]


# ---------------------------------------------------------------------------
# Dispatcher: fused single-kernel path when the graph fits in VMEM, else tiled
# ---------------------------------------------------------------------------
def gcn_forward(x, adj, params, *, dropout=0.5, training=False, seed=0,
                use_bf16=False):
    n, nfeat = x.shape
    nhid = params[0].shape[1]
    nclass = params[2].shape[1]
    limit = _vmem_limit_bytes()
    # Fused-path VMEM estimate: 2x for pipeline buffers on inputs/outputs plus
    # in-kernel temporaries (support1, h, support2, softmax temps).
    io = n * n + n * nfeat + nfeat * nhid + nhid + nhid * nclass + nclass
    temps = 2 * n * nhid + 3 * n * nclass
    fused_est = 4 * (2 * io + 2 * n * nclass + temps)
    if fused_est <= int(0.6 * limit):
        return gcn_forward_fused(x, adj, params, dropout=dropout,
                                 training=training, seed=seed)
    return gcn_forward_tiled(x, adj, params, dropout=dropout,
                             training=training, use_bf16=use_bf16)


# ---------------------------------------------------------------------------
# Parameter init (mirrors pygcn GraphConvolution.reset_parameters) + reference
# ---------------------------------------------------------------------------
def init_gcn_params(key, nfeat, nhid, nclass):
    k1, k2, k3, k4 = jax.random.split(key, 4)
    stdv1 = 1.0 / math.sqrt(nhid)
    stdv2 = 1.0 / math.sqrt(nclass)
    w1 = jax.random.uniform(k1, (nfeat, nhid), jnp.float32, -stdv1, stdv1)
    b1 = jax.random.uniform(k2, (nhid,), jnp.float32, -stdv1, stdv1)
    w2 = jax.random.uniform(k3, (nhid, nclass), jnp.float32, -stdv2, stdv2)
    b2 = jax.random.uniform(k4, (nclass,), jnp.float32, -stdv2, stdv2)
    return w1, b1, w2, b2


def make_norm_adj(key, n, p):
    a = (jax.random.uniform(key, (n, n)) < p).astype(jnp.float32)
    a = jnp.maximum(a, a.T) + jnp.eye(n, dtype=jnp.float32)
    return a / jnp.sum(a, axis=1, keepdims=True)


def gcn_reference(x, adj, params):
    w1, b1, w2, b2 = params
    h = jax.nn.relu(adj @ (x @ w1) + b1)
    y = adj @ (h @ w2) + b2
    return jax.nn.log_softmax(y, axis=1)


if __name__ == "__main__":
    key = jax.random.PRNGKey(0)
    k1, k2, k3, k4, k5, k6, k7, k8 = jax.random.split(key, 8)

    # --- test 1: small graph -> fully fused single-kernel path -------------
    N, NFEAT, NHID, NCLASS = 64, 32, 16, 8
    x = jax.random.normal(k1, (N, NFEAT), jnp.float32)
    adj = make_norm_adj(k2, N, p=0.1)
    params = init_gcn_params(k3, NFEAT, NHID, NCLASS)

    out = jax.block_until_ready(
        gcn_forward(x, adj, params, dropout=0.5, training=False))
    ref = gcn_reference(x, adj, params)
    assert out.shape == (N, NCLASS)
    err = float(jnp.max(jnp.abs(out - ref)))
    assert err < 1e-3, f"fused path max abs err {err}"

    # --- test 2: larger graph -> tiled path (512x512 adj tiles, f32) -------
    N2, NFEAT2, NHID2, NCLASS2 = 1024, 64, 32, 8
    x2 = jax.random.normal(k4, (N2, NFEAT2), jnp.float32)
    adj2 = make_norm_adj(k5, N2, p=0.01)
    params2 = init_gcn_params(k6, NFEAT2, NHID2, NCLASS2)

    out2 = jax.block_until_ready(
        gcn_forward_tiled(x2, adj2, params2, training=False))
    ref2 = gcn_reference(x2, adj2, params2)
    assert out2.shape == (N2, NCLASS2)
    err2 = float(jnp.max(jnp.abs(out2 - ref2)))
    assert err2 < 1e-3, f"tiled path max abs err {err2}"

    # --- test 3: non-divisible N -> zero-padded tiles (f32) -----------------
    N3 = 600
    x3 = jax.random.normal(k7, (N3, NFEAT2), jnp.float32)
    adj3 = make_norm_adj(k8, N3, p=0.02)
    out3 = jax.block_until_ready(
        gcn_forward_tiled(x3, adj3, params2, training=False))
    ref3 = gcn_reference(x3, adj3, params2)
    assert out3.shape == (N3, NCLASS2)
    err3 = float(jnp.max(jnp.abs(out3 - ref3)))
    assert err3 < 1e-3, f"padded tiled path max abs err {err3}"

    # --- test 4: tiled path with bf16 HBM streams (f32 accumulation) -------
    out4 = jax.block_until_ready(
        gcn_forward_tiled(x2, adj2, params2, training=False, use_bf16=True))
    assert out4.shape == (N2, NCLASS2)
    err4 = float(jnp.max(jnp.abs(out4 - ref2)))
    assert err4 < 1e-1, f"bf16 tiled path max abs err {err4}"

    print("KERNEL_OK")
</pallas_src>

<mosaic_0001>
module attributes {stable_mosaic.version = 11 : i64} {
  func.func @_gcn_fused_kernel(%arg0: i32, %arg1: memref<64x32xf32, #tpu.memory_space<vmem>>, %arg2: memref<64x64xf32, #tpu.memory_space<vmem>>, %arg3: memref<32x16xf32, #tpu.memory_space<vmem>>, %arg4: memref<1x16xf32, #tpu.memory_space<vmem>>, %arg5: memref<16x8xf32, #tpu.memory_space<vmem>>, %arg6: memref<1x8xf32, #tpu.memory_space<vmem>>, %arg7: memref<64x8xf32, #tpu.memory_space<vmem>>) attributes {dimension_semantics = [#tpu.dimension_semantics<arbitrary>], iteration_bounds = array<i64: 1>, scalar_prefetch = 0 : i64, scratch_operands = 0 : i64, tpu.core_type = #tpu.core_type<tc>, window_params = [{pipeline_mode = #tpu.pipeline_mode<synchronous>, transform_indices = @transform_0, window_bounds = array<i64: 64, 32>}, {pipeline_mode = #tpu.pipeline_mode<synchronous>, transform_indices = @transform_1, window_bounds = array<i64: 64, 64>}, {pipeline_mode = #tpu.pipeline_mode<synchronous>, transform_indices = @transform_2, window_bounds = array<i64: 32, 16>}, {pipeline_mode = #tpu.pipeline_mode<synchronous>, transform_indices = @transform_3, window_bounds = array<i64: 1, 16>}, {pipeline_mode = #tpu.pipeline_mode<synchronous>, transform_indices = @transform_4, window_bounds = array<i64: 16, 8>}, {pipeline_mode = #tpu.pipeline_mode<synchronous>, transform_indices = @transform_5, window_bounds = array<i64: 1, 8>}, {pipeline_mode = #tpu.pipeline_mode<synchronous>, transform_indices = @transform_6, window_bounds = array<i64: 64, 8>}]} {
    %c0 = arith.constant 0 : index
    %c0_0 = arith.constant 0 : index
    %0 = vector.load %arg1[%c0, %c0_0] : memref<64x32xf32, #tpu.memory_space<vmem>>, vector<64x32xf32>
    %c0_1 = arith.constant 0 : index
    %c0_2 = arith.constant 0 : index
    %1 = vector.load %arg2[%c0_1, %c0_2] : memref<64x64xf32, #tpu.memory_space<vmem>>, vector<64x64xf32>
    %c0_3 = arith.constant 0 : index
    %c0_4 = arith.constant 0 : index
    %2 = vector.load %arg3[%c0_3, %c0_4] : memref<32x16xf32, #tpu.memory_space<vmem>>, vector<32x16xf32>
    %cst = arith.constant dense<0.000000e+00> : vector<64x16xf32>
    %3 = tpu.matmul %0, %2, %cst {dimension_numbers = #tpu.dot_dimension_numbers<[1], [0], [0], [1], [0, 0, 1, 1], [], []>} : vector<64x32xf32>, vector<32x16xf32>, vector<64x16xf32> -> vector<64x16xf32>
    %cst_5 = arith.constant dense<0.000000e+00> : vector<64x16xf32>
    %4 = tpu.matmul %1, %3, %cst_5 {dimension_numbers = #tpu.dot_dimension_numbers<[1], [0], [0], [1], [0, 0, 1, 1], [], []>} : vector<64x64xf32>, vector<64x16xf32>, vector<64x16xf32> -> vector<64x16xf32>
    %c0_6 = arith.constant 0 : index
    %c0_7 = arith.constant 0 : index
    %5 = vector.load %arg4[%c0_6, %c0_7] : memref<1x16xf32, #tpu.memory_space<vmem>>, vector<1x16xf32>
    %6 = vector.broadcast %5 : vector<1x16xf32> to vector<64x16xf32>
    %7 = arith.addf %4, %6 : vector<64x16xf32>
    %cst_8 = arith.constant 0.000000e+00 : f32
    %8 = vector.broadcast %cst_8 : f32 to vector<64x16xf32>
    %9 = arith.maximumf %7, %8 : vector<64x16xf32>
    %c0_9 = arith.constant 0 : index
    %c0_10 = arith.constant 0 : index
    %10 = vector.load %arg5[%c0_9, %c0_10] : memref<16x8xf32, #tpu.memory_space<vmem>>, vector<16x8xf32>
    %cst_11 = arith.constant dense<0.000000e+00> : vector<64x8xf32>
    %11 = tpu.matmul %9, %10, %cst_11 {dimension_numbers = #tpu.dot_dimension_numbers<[1], [0], [0], [1], [0, 0, 1, 1], [], []>} : vector<64x16xf32>, vector<16x8xf32>, vector<64x8xf32> -> vector<64x8xf32>
    %cst_12 = arith.constant dense<0.000000e+00> : vector<64x8xf32>
    %12 = tpu.matmul %1, %11, %cst_12 {dimension_numbers = #tpu.dot_dimension_numbers<[1], [0], [0], [1], [0, 0, 1, 1], [], []>} : vector<64x64xf32>, vector<64x8xf32>, vector<64x8xf32> -> vector<64x8xf32>
    %c0_13 = arith.constant 0 : index
    %c0_14 = arith.constant 0 : index
    %13 = vector.load %arg6[%c0_13, %c0_14] : memref<1x8xf32, #tpu.memory_space<vmem>>, vector<1x8xf32>
    %14 = vector.broadcast %13 : vector<1x8xf32> to vector<64x8xf32>
    %15 = arith.addf %12, %14 : vector<64x8xf32>
    %cst_15 = arith.constant dense<0xFF800000> : vector<64xf32>
    %16 = vector.multi_reduction <maximumf>, %15, %cst_15 [1] : vector<64x8xf32> to vector<64xf32>
    %17 = vector.shape_cast %16 : vector<64xf32> to vector<64x1xf32>
    %18 = vector.broadcast %17 : vector<64x1xf32> to vector<64x8xf32>
    %19 = arith.subf %15, %18 : vector<64x8xf32>
    %20 = math.exp %19 : vector<64x8xf32>
    %cst_16 = arith.constant dense<0.000000e+00> : vector<64xf32>
    %21 = vector.multi_reduction <add>, %20, %cst_16 [1] : vector<64x8xf32> to vector<64xf32>
    %22 = vector.shape_cast %21 : vector<64xf32> to vector<64x1xf32>
    %23 = math.log %22 : vector<64x1xf32>
    %24 = vector.broadcast %23 : vector<64x1xf32> to vector<64x8xf32>
    %25 = arith.subf %19, %24 : vector<64x8xf32>
    %c0_17 = arith.constant 0 : index
    %c0_18 = arith.constant 0 : index
    %26 = vector.load %arg7[%c0_17, %c0_18] : memref<64x8xf32, #tpu.memory_space<vmem>>, vector<64x8xf32>
    tpu.vector_store %arg7[%c0_17, %c0_18], %25 {strides = array<i32>} : memref<64x8xf32, #tpu.memory_space<vmem>>, vector<64x8xf32>,
    return
  }
  func.func @transform_0(%arg0: i32) -> (i32, i32) {
    %c0_i32 = arith.constant 0 : i32
    %c0_i32_0 = arith.constant 0 : i32
    %c0_i32_1 = arith.constant 0 : i32
    return %c0_i32, %c0_i32_0 : i32, i32
  }
  func.func @transform_1(%arg0: i32) -> (i32, i32) {
    %c0_i32 = arith.constant 0 : i32
    %c0_i32_0 = arith.constant 0 : i32
    %c0_i32_1 = arith.constant 0 : i32
    return %c0_i32, %c0_i32_0 : i32, i32
  }
  func.func @transform_2(%arg0: i32) -> (i32, i32) {
    %c0_i32 = arith.constant 0 : i32
    %c0_i32_0 = arith.constant 0 : i32
    %c0_i32_1 = arith.constant 0 : i32
    return %c0_i32, %c0_i32_0 : i32, i32
  }
  func.func @transform_3(%arg0: i32) -> (i32, i32) {
    %c0_i32 = arith.constant 0 : i32
    %c0_i32_0 = arith.constant 0 : i32
    %c0_i32_1 = arith.constant 0 : i32
    return %c0_i32, %c0_i32_0 : i32, i32
  }
  func.func @transform_4(%arg0: i32) -> (i32, i32) {
    %c0_i32 = arith.constant 0 : i32
    %c0_i32_0 = arith.constant 0 : i32
    %c0_i32_1 = arith.constant 0 : i32
    return %c0_i32, %c0_i32_0 : i32, i32
  }
  func.func @transform_5(%arg0: i32) -> (i32, i32) {
    %c0_i32 = arith.constant 0 : i32
    %c0_i32_0 = arith.constant 0 : i32
    %c0_i32_1 = arith.constant 0 : i32
    return %c0_i32, %c0_i32_0 : i32, i32
  }
  func.func @transform_6(%arg0: i32) -> (i32, i32) {
    %c0_i32 = arith.constant 0 : i32
    %c0_i32_0 = arith.constant 0 : i32
    %c0_i32_1 = arith.constant 0 : i32
    return %c0_i32, %c0_i32_0 : i32, i32
  }
}

</mosaic_0001>

<llo_original>
// kernel: tpu_custom_call.1
$region0: #{tpu_custom_call.1}
  #allocation0 [shape = 'u32[]', space=smem, size = 0x4, offset = 0x4, fixed_abs, tag = 'smem constant byte address 0x4 - core index']
  #allocation1 [shape = 'u32[144,128]{1,0:T(1,128)}', space=vmem, size = 0x12000, scoped, tag = 'internal scratch']
  %s0 = inlined_call_operand.vmem [shape: f32[64,32], index: 0, kind: input, shape index: {}]
  %s1 = inlined_call_operand.vmem [shape: f32[64,64], index: 1, kind: input, shape index: {}]
  %s2 = inlined_call_operand.vmem [shape: f32[32,16], index: 2, kind: input, shape index: {}]
  %s3 = inlined_call_operand.vmem [shape: f32[1,16], index: 3, kind: input, shape index: {}]
  %s4 = inlined_call_operand.vmem [shape: f32[16,8], index: 4, kind: input, shape index: {}]
  %s5 = inlined_call_operand.vmem [shape: f32[1,8], index: 5, kind: input, shape index: {}]
  %s6 = inlined_call_operand.vmem [shape: f32[64,8], index: 6, kind: output, shape index: {}]
  %s7 = sld [smem:[#allocation0]]
  $region34: #{tpu_custom_call.1} parent=0
    _
  %s9 = ssub.s32 1, %s7
  %s10 = scalar_select 0, %s9, %s7
  // Predicated region
  $region2: #{tpu_custom_call.1} parent=0 // pred_check
    _
  $region3: #{tpu_custom_call.1} parent=0 // pred_check_branch
    %12 = sbr.rel (0) target = $region5
  $region4: #{tpu_custom_call.1} parent=0 // pred_region
    _
  $region5: #{tpu_custom_call.1} parent=0 // pred_fallthru
    _
  // Predicated region
  $region6: #{tpu_custom_call.1} parent=0 // pred_check
    _
  $region7: #{tpu_custom_call.1} parent=0 // pred_check_branch
    %14 = sbr.rel (0) target = $region9
  $region8: #{tpu_custom_call.1} parent=0 // pred_region
    _
  $region9: #{tpu_custom_call.1} parent=0 // pred_fallthru
    _
  // Predicated region
  $region10: #{tpu_custom_call.1} parent=0 // pred_check
    _
  $region11: #{tpu_custom_call.1} parent=0 // pred_check_branch
    %16 = sbr.rel (0) target = $region13
  $region12: #{tpu_custom_call.1} parent=0 // pred_region
    _
  $region13: #{tpu_custom_call.1} parent=0 // pred_fallthru
    _
  // Predicated region
  $region14: #{tpu_custom_call.1} parent=0 // pred_check
    _
  $region15: #{tpu_custom_call.1} parent=0 // pred_check_branch
    %18 = sbr.rel (0) target = $region17
  $region16: #{tpu_custom_call.1} parent=0 // pred_region
    _
  $region17: #{tpu_custom_call.1} parent=0 // pred_fallthru
    _
  // Predicated region
  $region18: #{tpu_custom_call.1} parent=0 // pred_check
    _
  $region19: #{tpu_custom_call.1} parent=0 // pred_check_branch
    %20 = sbr.rel (0) target = $region21
  $region20: #{tpu_custom_call.1} parent=0 // pred_region
    _
  $region21: #{tpu_custom_call.1} parent=0 // pred_fallthru
    _
  // Predicated region
  $region22: #{tpu_custom_call.1} parent=0 // pred_check
    _
  $region23: #{tpu_custom_call.1} parent=0 // pred_check_branch
    %22 = sbr.rel (0) target = $region25
  $region24: #{tpu_custom_call.1} parent=0 // pred_region
    _
  $region25: #{tpu_custom_call.1} parent=0 // pred_fallthru
    _
  %v23 = vld [vmem:[%s0] sm:$0xff]
  %v24 = vld [vmem:[%s0 + $0x8] sm:$0xff]
  %v25 = vld [vmem:[%s0 + $0x10] sm:$0xff]
  %v26 = vld [vmem:[%s0 + $0x18] sm:$0xff]
  %v27 = vld [vmem:[%s0 + $0x20] sm:$0xff]
  %v28 = vld [vmem:[%s0 + $0x28] sm:$0xff]
  %v29 = vld [vmem:[%s0 + $0x30] sm:$0xff]
  %v30 = vld [vmem:[%s0 + $0x38] sm:$0xff]
  %v31 = vld [vmem:[%s1] sm:$0xff]
  %v32 = vld [vmem:[%s1 + $0x8] sm:$0xff]
  %v33 = vld [vmem:[%s1 + $0x10] sm:$0xff]
  %v34 = vld [vmem:[%s1 + $0x18] sm:$0xff]
  %v35 = vld [vmem:[%s1 + $0x20] sm:$0xff]
  %v36 = vld [vmem:[%s1 + $0x28] sm:$0xff]
  %v37 = vld [vmem:[%s1 + $0x30] sm:$0xff]
  %v38 = vld [vmem:[%s1 + $0x38] sm:$0xff]
  %v39 = vld [vmem:[%s2] sm:$0xff]
  %v40 = vld [vmem:[%s2 + $0x8] sm:$0xff]
  %v41 = vld [vmem:[%s2 + $0x10] sm:$0xff]
  %v42 = vld [vmem:[%s2 + $0x18] sm:$0xff]
  %vm43 = vcmask 261120
  %v45 = vsel %vm43, %v23, 0
  %v48 = vsel %vm43, %v24, 0
  %v51 = vsel %vm43, %v25, 0
  %v54 = vsel %vm43, %v26, 0
  %v57 = vsel %vm43, %v27, 0
  %v60 = vsel %vm43, %v28, 0
  %v63 = vsel %vm43, %v29, 0
  %v66 = vsel %vm43, %v30, 0
  %68 = vmatprep.subr.mxu0 0.0
  %69 = vmatpush1.msra.mxu0 %v39
  %70 = vmatprep.subr.mxu0 0.0
  %71 = vmatpush1.msra.mxu0 %v40
  %72 = vmatprep.subr.mxu0 0.0
  %73 = vmatpush1.msra.mxu0 %v41
  %74 = vmatprep.subr.mxu0 0.0
  %75 = vmatpush1.msra.mxu0 %v42
  %76 = vmatprep.subr.mxu0 0.0
  %77 = vmatpush1.msra.mxu0 0.0
  %78 = vmatprep.subr.mxu0 0.0
  %79 = vmatpush1.msra.mxu0 0.0
  %80 = vmatprep.subr.mxu0 0.0
  %81 = vmatpush1.msra.mxu0 0.0
  %82 = vmatprep.subr.mxu0 0.0
  %83 = vmatpush1.msra.mxu0 0.0
  %84 = vmatprep.subr.mxu0 0.0
  %85 = vmatpush1.msra.mxu0 0.0
  %86 = vmatprep.subr.mxu0 0.0
  %87 = vmatpush1.msra.mxu0 0.0
  %88 = vmatprep.subr.mxu0 0.0
  %89 = vmatpush1.msra.mxu0 0.0
  %90 = vmatprep.subr.mxu0 0.0
  %91 = vmatpush1.msra.mxu0 0.0
  %92 = vmatprep.subr.mxu0 0.0
  %93 = vmatpush1.msra.mxu0 0.0
  %94 = vmatprep.subr.mxu0 0.0
  %95 = vmatpush1.msra.mxu0 0.0
  %96 = vmatprep.subr.mxu0 0.0
  %97 = vmatpush1.msra.mxu0 0.0
  %98 = vmatprep.subr.mxu0 0.0
  %99 = vmatpush1.msra.mxu0 0.0
  %100 = vmatprep.subr.mxu0 0.0
  %101 = vmatpush1.msra.mxu0 0.0
  %102 = vmatprep.subr.mxu0 0.0
  %103 = vmatpush1.msra.mxu0 0.0
  %104 = vmatprep.subr.mxu0 0.0
  %105 = vmatpush1.msra.mxu0 0.0
  %106 = vmatprep.subr.mxu0 0.0
  %107 = vmatpush1.msra.mxu0 0.0
  %108 = vmatprep.subr.mxu0 0.0
  %109 = vmatpush1.msra.mxu0 0.0
  %110 = vmatprep.subr.mxu0 0.0
  %111 = vmatpush1.msra.mxu0 0.0
  %112 = vmatprep.subr.mxu0 0.0
  %113 = vmatpush1.msra.mxu0 0.0
  %114 = vmatprep.subr.mxu0 0.0
  %115 = vmatpush1.msra.mxu0 0.0
  %116 = vmatprep.subr.mxu0 0.0
  %117 = vmatpush1.msra.mxu0 0.0
  %118 = vmatprep.subr.mxu0 0.0
  %119 = vmatpush1.msra.mxu0 0.0
  %120 = vmatprep.subr.mxu0 0.0
  %121 = vmatpush1.msra.mxu0 0.0
  %122 = vmatprep.subr.mxu0 0.0
  %123 = vmatpush1.msra.mxu0 0.0
  %124 = vmatprep.subr.mxu0 0.0
  %125 = vmatpush1.msra.mxu0 0.0
  %126 = vmatprep.subr.mxu0 0.0
  %127 = vmatpush1.msra.mxu0 0.0
  %128 = vmatprep.subr.mxu0 0.0
  %129 = vmatpush1.msra.mxu0 0.0
  %130 = vmatprep.subr.mxu0 0.0
  %131 = vmatpush1.msra.mxu0 0.0
  %132 = vmatprep.mubr.f32.mxu0 0.0
  %133 = vmatmul.mubr.f32.gmra.mrb[0].mxu0 %v45
  %v134 = vpop.f32.mrb[0].mxu0
  %v135 = vadd.f32 0.0, %v134
  %v136 = vpop.f32.mrb[0].mxu0
  %137 = vmatprep.mubr.f32.mxu0 0.0
  %138 = vmatmul.mubr.f32.gmra.mrb[0].mxu0 %v48
  %v139 = vpop.f32.mrb[0].mxu0
  %v140 = vadd.f32 0.0, %v139
  %v141 = vpop.f32.mrb[0].mxu0
  %142 = vmatprep.mubr.f32.mxu0 0.0
  %143 = vmatmul.mubr.f32.gmra.mrb[0].mxu0 %v51
  %v144 = vpop.f32.mrb[0].mxu0
  %v145 = vadd.f32 0.0, %v144
  %v146 = vpop.f32.mrb[0].mxu0
  %147 = vmatprep.mubr.f32.mxu0 0.0
  %148 = vmatmul.mubr.f32.gmra.mrb[0].mxu0 %v54
  %v149 = vpop.f32.mrb[0].mxu0
  %v150 = vadd.f32 0.0, %v149
  %v151 = vpop.f32.mrb[0].mxu0
  %152 = vmatprep.mubr.f32.mxu0 0.0
  %153 = vmatmul.mubr.f32.gmra.mrb[0].mxu0 %v57
  %v154 = vpop.f32.mrb[0].mxu0
  %v155 = vadd.f32 0.0, %v154
  %v156 = vpop.f32.mrb[0].mxu0
  %157 = vmatprep.mubr.f32.mxu0 0.0
  %158 = vmatmul.mubr.f32.gmra.mrb[0].mxu0 %v60
  %v159 = vpop.f32.mrb[0].mxu0
  %v160 = vadd.f32 0.0, %v159
  %v161 = vpop.f32.mrb[0].mxu0
  %162 = vmatprep.mubr.f32.mxu0 0.0
  %163 = vmatmul.mubr.f32.gmra.mrb[0].mxu0 %v63
  %v164 = vpop.f32.mrb[0].mxu0
  %v165 = vadd.f32 0.0, %v164
  %v166 = vpop.f32.mrb[0].mxu0
  %167 = vmatprep.mubr.f32.mxu0 0.0
  %168 = vmatmul.mubr.f32.gmra.mrb[0].mxu0 %v66
  %v169 = vpop.f32.mrb[0].mxu0
  %v170 = vadd.f32 0.0, %v169
  %v171 = vpop.f32.mrb[0].mxu0
  %172 = vdwg.mxu0
  %v173 = vld [vmem:[%s3] sm:$0x1]
  %v175 = vlaneseq
  %v176 = vshrl.u32 %v175, 7
  %v177 = vsub.s32 0, %v176
  %v178 = vrot.slane %v173, %v177
  %vm180 = vcmask 523264
  %v182 = vsel %vm180, %v31, 0
  %v185 = vsel %vm180, %v32, 0
  %v188 = vsel %vm180, %v33, 0
  %v191 = vsel %vm180, %v34, 0
  %v194 = vsel %vm180, %v35, 0
  %v197 = vsel %vm180, %v36, 0
  %v200 = vsel %vm180, %v37, 0
  %v203 = vsel %vm180, %v38, 0
  %205 = vmatprep.subr.mxu0 0.0
  %206 = vmatpush1.msra.mxu0 %v135
  %207 = vmatprep.subr.mxu0 0.0
  %208 = vmatpush1.msra.mxu0 %v140
  %209 = vmatprep.subr.mxu0 0.0
  %210 = vmatpush1.msra.mxu0 %v145
  %211 = vmatprep.subr.mxu0 0.0
  %212 = vmatpush1.msra.mxu0 %v150
  %213 = vmatprep.subr.mxu0 0.0
  %214 = vmatpush1.msra.mxu0 %v155
  %215 = vmatprep.subr.mxu0 0.0
  %216 = vmatpush1.msra.mxu0 %v160
  %217 = vmatprep.subr.mxu0 0.0
  %218 = vmatpush1.msra.mxu0 %v165
  %219 = vmatprep.subr.mxu0 0.0
  %220 = vmatpush1.msra.mxu0 %v170
  %221 = vmatprep.subr.mxu0 0.0
  %222 = vmatpush1.msra.mxu0 0.0
  %223 = vmatprep.subr.mxu0 0.0
  %224 = vmatpush1.msra.mxu0 0.0
  %225 = vmatprep.subr.mxu0 0.0
  %226 = vmatpush1.msra.mxu0 0.0
  %227 = vmatprep.subr.mxu0 0.0
  %228 = vmatpush1.msra.mxu0 0.0
  %229 = vmatprep.subr.mxu0 0.0
  %230 = vmatpush1.msra.mxu0 0.0
  %231 = vmatprep.subr.mxu0 0.0
  %232 = vmatpush1.msra.mxu0 0.0
  %233 = vmatprep.subr.mxu0 0.0
  %234 = vmatpush1.msra.mxu0 0.0
  %235 = vmatprep.subr.mxu0 0.0
  %236 = vmatpush1.msra.mxu0 0.0
  %237 = vmatprep.subr.mxu0 0.0
  %238 = vmatpush1.msra.mxu0 0.0
  %239 = vmatprep.subr.mxu0 0.0
  %240 = vmatpush1.msra.mxu0 0.0
  %241 = vmatprep.subr.mxu0 0.0
  %242 = vmatpush1.msra.mxu0 0.0
  %243 = vmatprep.subr.mxu0 0.0
  %244 = vmatpush1.msra.mxu0 0.0
  %245 = vmatprep.subr.mxu0 0.0
  %246 = vmatpush1.msra.mxu0 0.0
  %247 = vmatprep.subr.mxu0 0.0
  %248 = vmatpush1.msra.mxu0 0.0
  %249 = vmatprep.subr.mxu0 0.0
  %250 = vmatpush1.msra.mxu0 0.0
  %251 = vmatprep.subr.mxu0 0.0
  %252 = vmatpush1.msra.mxu0 0.0
  %253 = vmatprep.subr.mxu0 0.0
  %254 = vmatpush1.msra.mxu0 0.0
  %255 = vmatprep.subr.mxu0 0.0
  %256 = vmatpush1.msra.mxu0 0.0
  %257 = vmatprep.subr.mxu0 0.0
  %258 = vmatpush1.msra.mxu0 0.0
  %259 = vmatprep.subr.mxu0 0.0
  %260 = vmatpush1.msra.mxu0 0.0
  %261 = vmatprep.subr.mxu0 0.0
  %262 = vmatpush1.msra.mxu0 0.0
  %263 = vmatprep.subr.mxu0 0.0
  %264 = vmatpush1.msra.mxu0 0.0
  %265 = vmatprep.subr.mxu0 0.0
  %266 = vmatpush1.msra.mxu0 0.0
  %267 = vmatprep.subr.mxu0 0.0
  %268 = vmatpush1.msra.mxu0 0.0
  %269 = vmatprep.mubr.f32.mxu0 0.0
  %270 = vmatmul.mubr.f32.gmra.mrb[0].mxu0 %v182
  %v271 = vpop.f32.mrb[0].mxu0
  %v272 = vadd.f32 %v178, %v271
  %v273 = vpop.f32.mrb[0].mxu0
  %274 = vmatprep.mubr.f32.mxu0 0.0
  %275 = vmatmul.mubr.f32.gmra.mrb[0].mxu0 %v185
  %v276 = vpop.f32.mrb[0].mxu0
  %v277 = vadd.f32 %v178, %v276
  %v278 = vpop.f32.mrb[0].mxu0
  %279 = vmatprep.mubr.f32.mxu0 0.0
  %280 = vmatmul.mubr.f32.gmra.mrb[0].mxu0 %v188
  %v281 = vpop.f32.mrb[0].mxu0
  %v282 = vadd.f32 %v178, %v281
  %v283 = vpop.f32.mrb[0].mxu0
  %284 = vmatprep.mubr.f32.mxu0 0.0
  %285 = vmatmul.mubr.f32.gmra.mrb[0].mxu0 %v191
  %v286 = vpop.f32.mrb[0].mxu0
  %v287 = vadd.f32 %v178, %v286
  %v288 = vpop.f32.mrb[0].mxu0
  %289 = vmatprep.mubr.f32.mxu0 0.0
  %290 = vmatmul.mubr.f32.gmra.mrb[0].mxu0 %v194
  %v291 = vpop.f32.mrb[0].mxu0
  %v292 = vadd.f32 %v178, %v291
  %v293 = vpop.f32.mrb[0].mxu0
  %294 = vmatprep.mubr.f32.mxu0 0.0
  %295 = vmatmul.mubr.f32.gmra.mrb[0].mxu0 %v197
  %v296 = vpop.f32.mrb[0].mxu0
  %v297 = vadd.f32 %v178, %v296
  %v298 = vpop.f32.mrb[0].mxu0
  %299 = vmatprep.mubr.f32.mxu0 0.0
  %300 = vmatmul.mubr.f32.gmra.mrb[0].mxu0 %v200
  %v301 = vpop.f32.mrb[0].mxu0
  %v302 = vadd.f32 %v178, %v301
  %v303 = vpop.f32.mrb[0].mxu0
  %304 = vmatprep.mubr.f32.mxu0 0.0
  %305 = vmatmul.mubr.f32.gmra.mrb[0].mxu0 %v203
  %v306 = vpop.f32.mrb[0].mxu0
  %v307 = vadd.f32 %v178, %v306
  %v308 = vpop.f32.mrb[0].mxu0
  %309 = vdwg.mxu0
  %v310 = vmax.f32 %v272, 0.0
  %v311 = vmax.f32 %v277, 0.0
  %v312 = vmax.f32 %v282, 0.0
  %v313 = vmax.f32 %v287, 0.0
  %v314 = vmax.f32 %v292, 0.0
  %v315 = vmax.f32 %v297, 0.0
  %v316 = vmax.f32 %v302, 0.0
  %v317 = vmax.f32 %v307, 0.0
  %v318 = vld [vmem:[%s4] sm:$0xff]
  %v319 = vld [vmem:[%s4 + $0x8] sm:$0xff]
  %vm320 = vcmask 130048
  %v322 = vsel %vm320, %v310, 0
  %v325 = vsel %vm320, %v311, 0
  %v328 = vsel %vm320, %v312, 0
  %v331 = vsel %vm320, %v313, 0
  %v334 = vsel %vm320, %v314, 0
  %v337 = vsel %vm320, %v315, 0
  %v340 = vsel %vm320, %v316, 0
  %v343 = vsel %vm320, %v317, 0
  %345 = vmatprep.subr.mxu0 0.0
  %346 = vmatpush1.msra.mxu0 %v318
  %347 = vmatprep.subr.mxu0 0.0
  %348 = vmatpush1.msra.mxu0 %v319
  %349 = vmatprep.subr.mxu0 0.0
  %350 = vmatpush1.msra.mxu0 0.0
  %351 = vmatprep.subr.mxu0 0.0
  %352 = vmatpush1.msra.mxu0 0.0
  %353 = vmatprep.subr.mxu0 0.0
  %354 = vmatpush1.msra.mxu0 0.0
  %355 = vmatprep.subr.mxu0 0.0
  %356 = vmatpush1.msra.mxu0 0.0
  %357 = vmatprep.subr.mxu0 0.0
  %358 = vmatpush1.msra.mxu0 0.0
  %359 = vmatprep.subr.mxu0 0.0
  %360 = vmatpush1.msra.mxu0 0.0
  %361 = vmatprep.subr.mxu0 0.0
  %362 = vmatpush1.msra.mxu0 0.0
  %363 = vmatprep.subr.mxu0 0.0
  %364 = vmatpush1.msra.mxu0 0.0
  %365 = vmatprep.subr.mxu0 0.0
  %366 = vmatpush1.msra.mxu0 0.0
  %367 = vmatprep.subr.mxu0 0.0
  %368 = vmatpush1.msra.mxu0 0.0
  %369 = vmatprep.subr.mxu0 0.0
  %370 = vmatpush1.msra.mxu0 0.0
  %371 = vmatprep.subr.mxu0 0.0
  %372 = vmatpush1.msra.mxu0 0.0
  %373 = vmatprep.subr.mxu0 0.0
  %374 = vmatpush1.msra.mxu0 0.0
  %375 = vmatprep.subr.mxu0 0.0
  %376 = vmatpush1.msra.mxu0 0.0
  %377 = vmatprep.subr.mxu0 0.0
  %378 = vmatpush1.msra.mxu0 0.0
  %379 = vmatprep.subr.mxu0 0.0
  %380 = vmatpush1.msra.mxu0 0.0
  %381 = vmatprep.subr.mxu0 0.0
  %382 = vmatpush1.msra.mxu0 0.0
  %383 = vmatprep.subr.mxu0 0.0
  %384 = vmatpush1.msra.mxu0 0.0
  %385 = vmatprep.subr.mxu0 0.0
  %386 = vmatpush1.msra.mxu0 0.0
  %387 = vmatprep.subr.mxu0 0.0
  %388 = vmatpush1.msra.mxu0 0.0
  %389 = vmatprep.subr.mxu0 0.0
  %390 = vmatpush1.msra.mxu0 0.0
  %391 = vmatprep.subr.mxu0 0.0
  %392 = vmatpush1.msra.mxu0 0.0
  %393 = vmatprep.subr.mxu0 0.0
  %394 = vmatpush1.msra.mxu0 0.0
  %395 = vmatprep.subr.mxu0 0.0
  %396 = vmatpush1.msra.mxu0 0.0
  %397 = vmatprep.subr.mxu0 0.0
  %398 = vmatpush1.msra.mxu0 0.0
  %399 = vmatprep.subr.mxu0 0.0
  %400 = vmatpush1.msra.mxu0 0.0
  %401 = vmatprep.subr.mxu0 0.0
  %402 = vmatpush1.msra.mxu0 0.0
  %403 = vmatprep.subr.mxu0 0.0
  %404 = vmatpush1.msra.mxu0 0.0
  %405 = vmatprep.subr.mxu0 0.0
  %406 = vmatpush1.msra.mxu0 0.0
  %407 = vmatprep.subr.mxu0 0.0
  %408 = vmatpush1.msra.mxu0 0.0
  %409 = vmatprep.mubr.f32.mxu0 0.0
  %410 = vmatmul.mubr.f32.gmra.mrb[0].mxu0 %v322
  %v411 = vpop.f32.mrb[0].mxu0
  %v412 = vadd.f32 0.0, %v411
  %v413 = vpop.f32.mrb[0].mxu0
  %414 = vmatprep.mubr.f32.mxu0 0.0
  %415 = vmatmul.mubr.f32.gmra.mrb[0].mxu0 %v325
  %v416 = vpop.f32.mrb[0].mxu0
  %v417 = vadd.f32 0.0, %v416
  %v418 = vpop.f32.mrb[0].mxu0
  %419 = vmatprep.mubr.f32.mxu0 0.0
  %420 = vmatmul.mubr.f32.gmra.mrb[0].mxu0 %v328
  %v421 = vpop.f32.mrb[0].mxu0
  %v422 = vadd.f32 0.0, %v421
  %v423 = vpop.f32.mrb[0].mxu0
  %424 = vmatprep.mubr.f32.mxu0 0.0
  %425 = vmatmul.mubr.f32.gmra.mrb[0].mxu0 %v331
  %v426 = vpop.f32.mrb[0].mxu0
  %v427 = vadd.f32 0.0, %v426
  %v428 = vpop.f32.mrb[0].mxu0
  %429 = vmatprep.mubr.f32.mxu0 0.0
  %430 = vmatmul.mubr.f32.gmra.mrb[0].mxu0 %v334
  %v431 = vpop.f32.mrb[0].mxu0
  %v432 = vadd.f32 0.0, %v431
  %v433 = vpop.f32.mrb[0].mxu0
  %434 = vmatprep.mubr.f32.mxu0 0.0
  %435 = vmatmul.mubr.f32.gmra.mrb[0].mxu0 %v337
  %v436 = vpop.f32.mrb[0].mxu0
  %v437 = vadd.f32 0.0, %v436
  %v438 = vpop.f32.mrb[0].mxu0
  %439 = vmatprep.mubr.f32.mxu0 0.0
  %440 = vmatmul.mubr.f32.gmra.mrb[0].mxu0 %v340
  %v441 = vpop.f32.mrb[0].mxu0
  %v442 = vadd.f32 0.0, %v441
  %v443 = vpop.f32.mrb[0].mxu0
  %444 = vmatprep.mubr.f32.mxu0 0.0
  %445 = vmatmul.mubr.f32.gmra.mrb[0].mxu0 %v343
  %v446 = vpop.f32.mrb[0].mxu0
  %v447 = vadd.f32 0.0, %v446
  %v448 = vpop.f32.mrb[0].mxu0
  %449 = vdwg.mxu0
  %v450 = vld [vmem:[%s5] sm:$0x1]
  %v452 = vlaneseq
  %v453 = vshrl.u32 %v452, 7
  %v454 = vsub.s32 0, %v453
  %v455 = vrot.slane %v450, %v454
  %457 = vmatprep.subr.mxu0 0.0
  %458 = vmatpush1.msra.mxu0 %v412
  %459 = vmatprep.subr.mxu0 0.0
  %460 = vmatpush1.msra.mxu0 %v417
  %461 = vmatprep.subr.mxu0 0.0
  %462 = vmatpush1.msra.mxu0 %v422
  %463 = vmatprep.subr.mxu0 0.0
  %464 = vmatpush1.msra.mxu0 %v427
  %465 = vmatprep.subr.mxu0 0.0
  %466 = vmatpush1.msra.mxu0 %v432
  %467 = vmatprep.subr.mxu0 0.0
  %468 = vmatpush1.msra.mxu0 %v437
  %469 = vmatprep.subr.mxu0 0.0
  %470 = vmatpush1.msra.mxu0 %v442
  %471 = vmatprep.subr.mxu0 0.0
  %472 = vmatpush1.msra.mxu0 %v447
  %473 = vmatprep.subr.mxu0 0.0
  %474 = vmatpush1.msra.mxu0 0.0
  %475 = vmatprep.subr.mxu0 0.0
  %476 = vmatpush1.msra.mxu0 0.0
  %477 = vmatprep.subr.mxu0 0.0
  %478 = vmatpush1.msra.mxu0 0.0
  %479 = vmatprep.subr.mxu0 0.0
  %480 = vmatpush1.msra.mxu0 0.0
  %481 = vmatprep.subr.mxu0 0.0
  %482 = vmatpush1.msra.mxu0 0.0
  %483 = vmatprep.subr.mxu0 0.0
  %484 = vmatpush1.msra.mxu0 0.0
  %485 = vmatprep.subr.mxu0 0.0
  %486 = vmatpush1.msra.mxu0 0.0
  %487 = vmatprep.subr.mxu0 0.0
  %488 = vmatpush1.msra.mxu0 0.0
  %489 = vmatprep.subr.mxu0 0.0
  %490 = vmatpush1.msra.mxu0 0.0
  %491 = vmatprep.subr.mxu0 0.0
  %492 = vmatpush1.msra.mxu0 0.0
  %493 = vmatprep.subr.mxu0 0.0
  %494 = vmatpush1.msra.mxu0 0.0
  %495 = vmatprep.subr.mxu0 0.0
  %496 = vmatpush1.msra.mxu0 0.0
  %497 = vmatprep.subr.mxu0 0.0
  %498 = vmatpush1.msra.mxu0 0.0
  %499 = vmatprep.subr.mxu0 0.0
  %500 = vmatpush1.msra.mxu0 0.0
  %501 = vmatprep.subr.mxu0 0.0
  %502 = vmatpush1.msra.mxu0 0.0
  %503 = vmatprep.subr.mxu0 0.0
  %504 = vmatpush1.msra.mxu0 0.0
  %505 = vmatprep.subr.mxu0 0.0
  %506 = vmatpush1.msra.mxu0 0.0
  %507 = vmatprep.subr.mxu0 0.0
  %508 = vmatpush1.msra.mxu0 0.0
  %509 = vmatprep.subr.mxu0 0.0
  %510 = vmatpush1.msra.mxu0 0.0
  %511 = vmatprep.subr.mxu0 0.0
  %512 = vmatpush1.msra.mxu0 0.0
  %513 = vmatprep.subr.mxu0 0.0
  %514 = vmatpush1.msra.mxu0 0.0
  %515 = vmatprep.subr.mxu0 0.0
  %516 = vmatpush1.msra.mxu0 0.0
  %517 = vmatprep.subr.mxu0 0.0
  %518 = vmatpush1.msra.mxu0 0.0
  %519 = vmatprep.subr.mxu0 0.0
  %520 = vmatpush1.msra.mxu0 0.0
  %521 = vmatprep.mubr.f32.mxu0 0.0
  %522 = vmatmul.mubr.f32.gmra.mrb[0].mxu0 %v182
  %v523 = vpop.f32.mrb[0].mxu0
  %v524 = vadd.f32 %v455, %v523
  %v525 = vpop.f32.mrb[0].mxu0
  %526 = vmatprep.mubr.f32.mxu0 0.0
  %527 = vmatmul.mubr.f32.gmra.mrb[0].mxu0 %v185
  %v528 = vpop.f32.mrb[0].mxu0
  %v529 = vadd.f32 %v455, %v528
  %v530 = vpop.f32.mrb[0].mxu0
  %531 = vmatprep.mubr.f32.mxu0 0.0
  %532 = vmatmul.mubr.f32.gmra.mrb[0].mxu0 %v188
  %v533 = vpop.f32.mrb[0].mxu0
  %v534 = vadd.f32 %v455, %v533
  %v535 = vpop.f32.mrb[0].mxu0
  %536 = vmatprep.mubr.f32.mxu0 0.0
  %537 = vmatmul.mubr.f32.gmra.mrb[0].mxu0 %v191
  %v538 = vpop.f32.mrb[0].mxu0
  %v539 = vadd.f32 %v455, %v538
  %v540 = vpop.f32.mrb[0].mxu0
  %541 = vmatprep.mubr.f32.mxu0 0.0
  %542 = vmatmul.mubr.f32.gmra.mrb[0].mxu0 %v194
  %v543 = vpop.f32.mrb[0].mxu0
  %v544 = vadd.f32 %v455, %v543
  %v545 = vpop.f32.mrb[0].mxu0
  %546 = vmatprep.mubr.f32.mxu0 0.0
  %547 = vmatmul.mubr.f32.gmra.mrb[0].mxu0 %v197
  %v548 = vpop.f32.mrb[0].mxu0
  %v549 = vadd.f32 %v455, %v548
  %v550 = vpop.f32.mrb[0].mxu0
  %551 = vmatprep.mubr.f32.mxu0 0.0
  %552 = vmatmul.mubr.f32.gmra.mrb[0].mxu0 %v200
  %v553 = vpop.f32.mrb[0].mxu0
  %v554 = vadd.f32 %v455, %v553
  %v555 = vpop.f32.mrb[0].mxu0
  %556 = vmatprep.mubr.f32.mxu0 0.0
  %557 = vmatmul.mubr.f32.gmra.mrb[0].mxu0 %v203
  %v558 = vpop.f32.mrb[0].mxu0
  %v559 = vadd.f32 %v455, %v558
  %v560 = vpop.f32.mrb[0].mxu0
  %561 = vdwg.mxu0
  %vm562 = vcmask 64512
  %v563 = vsel %vm562, %v524, -inf
  %564 = vmax.xlane.f32.xlu0 %v563
  %v565 = vpop.xlane.xlu0 %564
  %v566 = vsel %vm562, %v529, -inf
  %567 = vmax.xlane.f32.xlu0 %v566
  %v568 = vpop.xlane.xlu0 %567
  %v569 = vsel %vm562, %v534, -inf
  %570 = vmax.xlane.f32.xlu0 %v569
  %v571 = vpop.xlane.xlu0 %570
  %v572 = vsel %vm562, %v539, -inf
  %573 = vmax.xlane.f32.xlu0 %v572
  %v574 = vpop.xlane.xlu0 %573
  %v575 = vsel %vm562, %v544, -inf
  %576 = vmax.xlane.f32.xlu0 %v575
  %v577 = vpop.xlane.xlu0 %576
  %v578 = vsel %vm562, %v549, -inf
  %579 = vmax.xlane.f32.xlu0 %v578
  %v580 = vpop.xlane.xlu0 %579
  %v581 = vsel %vm562, %v554, -inf
  %582 = vmax.xlane.f32.xlu0 %v581
  %v583 = vpop.xlane.xlu0 %582
  %v584 = vsel %vm562, %v559, -inf
  %585 = vmax.xlane.f32.xlu0 %v584
  %v586 = vpop.xlane.xlu0 %585
  %v587 = vsub.f32 %v524, %v565
  %v588 = vsub.f32 %v529, %v568
  %v589 = vsub.f32 %v534, %v571
  %v590 = vsub.f32 %v539, %v574
  %v591 = vsub.f32 %v544, %v577
  %v592 = vsub.f32 %v549, %v580
  %v593 = vsub.f32 %v554, %v583
  %v594 = vsub.f32 %v559, %v586
  %v595 = vmul.f32 %v587, 1.442695
  %v596 = vpow.pop %v595
  %v597 = vmul.f32 %v588, 1.442695
  %v598 = vpow.pop %v597
  %v599 = vmul.f32 %v589, 1.442695
  %v600 = vpow.pop %v599
  %v601 = vmul.f32 %v590, 1.442695
  %v602 = vpow.pop %v601
  %v603 = vmul.f32 %v591, 1.442695
  %v604 = vpow.pop %v603
  %v605 = vmul.f32 %v592, 1.442695
  %v606 = vpow.pop %v605
  %v607 = vmul.f32 %v593, 1.442695
  %v608 = vpow.pop %v607
  %v609 = vmul.f32 %v594, 1.442695
  %v610 = vpow.pop %v609
  %v611 = vsel %vm562, %v596, 0.0
  %612 = vadd.xlane.f32.xlu0 %v611
  %v613 = vpop.xlane.xlu0 %612
  %v614 = vsel %vm562, %v598, 0.0
  %615 = vadd.xlane.f32.xlu0 %v614
  %v616 = vpop.xlane.xlu0 %615
  %v617 = vsel %vm562, %v600, 0.0
  %618 = vadd.xlane.f32.xlu0 %v617
  %v619 = vpop.xlane.xlu0 %618
  %v620 = vsel %vm562, %v602, 0.0
  %621 = vadd.xlane.f32.xlu0 %v620
  %v622 = vpop.xlane.xlu0 %621
  %v623 = vsel %vm562, %v604, 0.0
  %624 = vadd.xlane.f32.xlu0 %v623
  %v625 = vpop.xlane.xlu0 %624
  %v626 = vsel %vm562, %v606, 0.0
  %627 = vadd.xlane.f32.xlu0 %v626
  %v628 = vpop.xlane.xlu0 %627
  %v629 = vsel %vm562, %v608, 0.0
  %630 = vadd.xlane.f32.xlu0 %v629
  %v631 = vpop.xlane.xlu0 %630
  %v632 = vsel %vm562, %v610, 0.0
  %633 = vadd.xlane.f32.xlu0 %v632
  %v634 = vpop.xlane.xlu0 %633
  %v635 = vlog2.pop %v613
  %v636 = vmul.f32 %v635, 0.6931472
  %v637 = vlog2.pop %v616
  %v638 = vmul.f32 %v637, 0.6931472
  %v639 = vlog2.pop %v619
  %v640 = vmul.f32 %v639, 0.6931472
  %v641 = vlog2.pop %v622
  %v642 = vmul.f32 %v641, 0.6931472
  %v643 = vlog2.pop %v625
  %v644 = vmul.f32 %v643, 0.6931472
  %v645 = vlog2.pop %v628
  %v646 = vmul.f32 %v645, 0.6931472
  %v647 = vlog2.pop %v631
  %v648 = vmul.f32 %v647, 0.6931472
  %v649 = vlog2.pop %v634
  %v650 = vmul.f32 %v649, 0.6931472
  %v651 = vsub.f32 %v587, %v636
  %v652 = vsub.f32 %v588, %v638
  %v653 = vsub.f32 %v589, %v640
  %v654 = vsub.f32 %v590, %v642
  %v655 = vsub.f32 %v591, %v644
  %v656 = vsub.f32 %v592, %v646
  %v657 = vsub.f32 %v593, %v648
  %v658 = vsub.f32 %v594, %v650
  %659 = vst.msk [vmem:[%s6] sm:$0xff] %vm562, %v651
  %660 = vst.msk [vmem:[%s6 + $0x8] sm:$0xff] %vm562, %v652
  %661 = vst.msk [vmem:[%s6 + $0x10] sm:$0xff] %vm562, %v653
  %662 = vst.msk [vmem:[%s6 + $0x18] sm:$0xff] %vm562, %v654
  %663 = vst.msk [vmem:[%s6 + $0x20] sm:$0xff] %vm562, %v655
  %664 = vst.msk [vmem:[%s6 + $0x28] sm:$0xff] %vm562, %v656
  %665 = vst.msk [vmem:[%s6 + $0x30] sm:$0xff] %vm562, %v657
  %666 = vst.msk [vmem:[%s6 + $0x38] sm:$0xff] %vm562, %v658
  // Predicated region
  $region26: #{tpu_custom_call.1} parent=0 // pred_check
    _
  $region27: #{tpu_custom_call.1} parent=0 // pred_check_branch
    %668 = sbr.rel (0) target = $region29
  $region28: #{tpu_custom_call.1} parent=0 // pred_region
    _
  $region29: #{tpu_custom_call.1} parent=0 // pred_fallthru
    _
  // Predicated region
  $region30: #{tpu_custom_call.1} parent=0 // pred_check
    _
  $region31: #{tpu_custom_call.1} parent=0 // pred_check_branch
    %670 = sbr.rel (0) target = $region33
  $region32: #{tpu_custom_call.1} parent=0 // pred_region
    _
  $region33: #{tpu_custom_call.1} parent=0 // pred_fallthru
    _

</llo_original>
